<compile_context>
chip_gen: v6e
topology: v6e:2x2x1
jax: 0.10.0
libtpu: 0.0.40
codegen_flags: <defaults>
</compile_context>

<pallas_src>
import numpy as np
import jax
import jax.numpy as jnp
from jax.experimental import pallas as pl
from jax.experimental.pallas import tpu as pltpu

WEIGHTS = (1.0, 1.0, 0.0, 0.0)  # head, belly, neck, back (as in the module)


def _make_kernel(active_parts, n_total):
    """active_parts: tuple of (vert_lane_off, vert_num, weight, tgt_lane_off, tgt_num)."""
    inv_n = np.float32(1.0 / n_total)

    def kernel(verts_ref, params_ref, vert2d_ref, loss_ref):
        # lane-dense vertex rows: (B, N_pad)
        vx = verts_ref[0]
        vy = verts_ref[1]
        vz = verts_ref[2]

        # per-batch scalar columns, all sliced out of the single packed tile
        def col(k):
            return params_ref[:, k:k + 1]  # (B, 1), broadcast across lanes

        s, tx, ty = col(0), col(1), col(2)
        qw, qx, qy, qz = col(3), col(4), col(5), col(6)

        # quaternion rotation: v' = v + qw * t + u x t, with t = 2 * (u x v)
        cx = 2.0 * (qy * vz - qz * vy)
        cy = 2.0 * (qz * vx - qx * vz)
        cz = 2.0 * (qx * vy - qy * vx)
        rx = vx + qw * cx + (qy * cz - qz * cy)
        ry = vy + qw * cy + (qz * cx - qx * cz)

        # TODO(synk): SoftRenderer.project_points source not provided; assumed
        # standard weak-perspective projection: scale * R(q) x + trans, keep xy.
        px = s * rx + tx  # (B, N_pad)
        py = s * ry + ty

        # full 128-lane stores
        vert2d_ref[0] = px
        vert2d_ref[1] = py

        lane = jax.lax.broadcasted_iota(jnp.int32, px.shape, 1)
        cdist = jnp.zeros_like(px)
        for v_off, v_num, w, t_off, t_num in active_parts:
            # unrolled running minimum over this part's target points (pure VPU)
            mind = None
            for m in range(t_num):
                bx = col(t_off + 2 * m)
                by = col(t_off + 2 * m + 1)
                dx = px - bx
                dy = py - by
                d = dx * dx + dy * dy
                mind = d if mind is None else jnp.minimum(mind, d)
            part_mask = (lane >= v_off) & (lane < v_off + v_num)
            val = mind if w == 1.0 else w * mind
            # parts occupy disjoint lane ranges; padded / zero-weight lanes stay 0
            cdist = jnp.where(part_mask, val, cdist)

        # fused per-batch mean; divisor is the TRUE vertex count (padded lanes
        # and zero-weight parts contribute exact zeros to the sum)
        loss_ref[...] = jnp.sum(cdist, axis=1, keepdims=True) * inv_n

    return kernel


class CorrLossChamfer:
    """JAX/Pallas port of nnutils.loss_utils.CorrLossChamfer (forward only)."""

    def __init__(self, head_idx, belly_idx, neck_idx, back_idx):
        # In the original module these index sets come from .npy files; here
        # they are provided deterministically in-script.
        parts = [np.asarray(p, np.int32)
                 for p in (head_idx, belly_idx, neck_idx, back_idx)]
        all_idx = np.concatenate(parts)
        self.n_total = int(all_idx.shape[0])
        self.part_sizes = tuple(len(p) for p in parts)
        self.weights = WEIGHTS
        # pad the gather index list so the vertex/lane axis is a multiple of 128
        self.n_pad = max(128, -(-self.n_total // 128) * 128)
        pad = np.zeros(self.n_pad - self.n_total, np.int32)
        self.all_idx = jnp.asarray(all_idx, jnp.int32)                 # true indices
        self.all_idx_padded = jnp.asarray(np.concatenate([all_idx, pad]),
                                          jnp.int32)                   # lane-padded
        self._fwd = jax.jit(self._forward, static_argnames=("avg",))

    # ------------------------------------------------------------------ #
    def _forward(self, head_points, belly_points, neck_points, back_points,
                 verts, cams, avg):
        parts_pts = (head_points, belly_points, neck_points, back_points)
        bs = head_points.shape[0]

        # gather selected vertices (plus dummy padding indices) and go
        # coordinate-major, lane-dense: (B, V, 3) -> (3, B, N_pad)
        verts_g = jnp.take(verts.astype(jnp.float32), self.all_idx_padded, axis=1)
        verts_t = jnp.transpose(verts_g, (2, 0, 1))

        # pack per-batch scalars into ONE lane-major tile:
        # [scale, tx, ty, qw, qx, qy, qz, x0, y0, x1, y1, ...]  -> (B, 7 + 2*M)
        active = []
        pieces = [cams.astype(jnp.float32)]
        lane_off = int(cams.shape[1])  # 7
        v_off = 0
        for pts, n_v, w in zip(parts_pts, self.part_sizes, self.weights):
            if w != 0.0:
                m = int(pts.shape[1])
                active.append((v_off, n_v, float(w), lane_off, m))
                pieces.append(pts.astype(jnp.float32).reshape(bs, 2 * m))
                lane_off += 2 * m
            v_off += n_v
        params = pieces[0] if len(pieces) == 1 else jnp.concatenate(pieces, axis=1)

        vert2d_t, loss_col = pl.pallas_call(
            _make_kernel(tuple(active), self.n_total),
            out_shape=(jax.ShapeDtypeStruct((2, bs, self.n_pad), jnp.float32),
                       jax.ShapeDtypeStruct((bs, 1), jnp.float32)),
            in_specs=[pl.BlockSpec(memory_space=pltpu.MemorySpace.VMEM)] * 2,
            out_specs=(pl.BlockSpec(memory_space=pltpu.MemorySpace.VMEM),
                       pl.BlockSpec(memory_space=pltpu.MemorySpace.VMEM)),
        )(verts_t, params)

        # restore the module's (B, N, 2) layout and drop the padded lanes
        vert2d = jnp.transpose(vert2d_t, (1, 2, 0))[:, :self.n_total, :]
        loss = loss_col[:, 0]  # (B,)
        if avg:
            return jnp.mean(loss), vert2d
        return loss

    def __call__(self, head_points, belly_points, neck_points, back_points,
                 verts, cams, avg=True):
        return self._fwd(head_points, belly_points, neck_points, back_points,
                         verts, cams, avg=avg)


# ---------------- pure-JAX reference (for correctness check) ----------------
def _project_points_ref(x, cams):
    s = cams[:, 0][:, None, None]
    t = cams[:, 1:3][:, None, :]
    qw = cams[:, 3][:, None, None]
    qv = jnp.broadcast_to(cams[:, 4:7][:, None, :], x.shape)
    c = 2.0 * jnp.cross(qv, x)
    r = x + qw * c + jnp.cross(qv, c)
    return s * r[..., :2] + t


def _reference(head_points, belly_points, neck_points, back_points, verts, cams,
               all_idx, part_sizes, weights):
    vert_coords = verts[:, all_idx, :]
    vert2d = _project_points_ref(vert_coords, cams)
    offs = np.cumsum([0] + list(part_sizes))
    parts = (head_points, belly_points, neck_points, back_points)
    cdists = []
    for i, p in enumerate(parts):
        a = vert2d[:, offs[i]:offs[i + 1], :]
        d = jnp.sum((a[:, :, None, :] - p[:, None, :, :]) ** 2, axis=-1)
        cdists.append(weights[i] * jnp.min(d, axis=-1))
    cdist = jnp.concatenate(cdists, axis=1)
    loss = jnp.mean(cdist, axis=1)
    return jnp.mean(loss), vert2d


if __name__ == "__main__":
    key = jax.random.PRNGKey(0)
    B, V = 2, 64

    # deterministic "vertex index" sets (stand-ins for the .npy index files)
    head_idx = np.arange(0, 12)
    belly_idx = np.arange(12, 24)
    neck_idx = np.arange(24, 32)
    back_idx = np.arange(32, 48)

    k1, k2, k3, k4, k5, k6, k7, k8 = jax.random.split(key, 8)
    verts = jax.random.normal(k1, (B, V, 3), jnp.float32)
    quat = jax.random.normal(k2, (B, 4), jnp.float32)
    quat = quat / jnp.linalg.norm(quat, axis=1, keepdims=True)
    scale = 1.0 + 0.1 * jax.random.normal(k3, (B, 1), jnp.float32)
    trans = 0.1 * jax.random.normal(k4, (B, 2), jnp.float32)
    cams = jnp.concatenate([scale, trans, quat], axis=1)  # (B, 7)

    head_points = jax.random.uniform(k5, (B, 10, 2), jnp.float32, -1.0, 1.0)
    belly_points = jax.random.uniform(k6, (B, 9, 2), jnp.float32, -1.0, 1.0)
    neck_points = jax.random.uniform(k7, (B, 7, 2), jnp.float32, -1.0, 1.0)
    back_points = jax.random.uniform(k8, (B, 11, 2), jnp.float32, -1.0, 1.0)

    mod = CorrLossChamfer(head_idx, belly_idx, neck_idx, back_idx)
    loss, vert2d = mod(head_points, belly_points, neck_points, back_points,
                       verts, cams, avg=True)
    loss = jax.block_until_ready(loss)
    vert2d = jax.block_until_ready(vert2d)

    loss_ref, vert2d_ref = _reference(
        head_points, belly_points, neck_points, back_points, verts, cams,
        mod.all_idx, mod.part_sizes, mod.weights)

    assert jnp.allclose(vert2d, vert2d_ref, atol=1e-4, rtol=1e-4), "vert2d mismatch"
    assert jnp.allclose(loss, loss_ref, atol=1e-5, rtol=1e-4), "loss mismatch"
    print("KERNEL_OK")
</pallas_src>

<mosaic_0001>
module attributes {stable_mosaic.version = 11 : i64} {
  func.func @kernel(%arg0: memref<3x2x128xf32, #tpu.memory_space<vmem>>, %arg1: memref<2x45xf32, #tpu.memory_space<vmem>>, %arg2: memref<2x2x128xf32, #tpu.memory_space<vmem>>, %arg3: memref<2x1xf32, #tpu.memory_space<vmem>>) attributes {dimension_semantics = [], scalar_prefetch = 0 : i64, scratch_operands = 0 : i64, tpu.core_type = #tpu.core_type<tc>} {
    %c0 = arith.constant 0 : index
    %c0_0 = arith.constant 0 : index
    %c0_1 = arith.constant 0 : index
    %0 = vector.load %arg0[%c0, %c0_0, %c0_1] : memref<3x2x128xf32, #tpu.memory_space<vmem>>, vector<1x2x128xf32>
    %1 = vector.shape_cast %0 : vector<1x2x128xf32> to vector<2x128xf32>
    %c1 = arith.constant 1 : index
    %c0_2 = arith.constant 0 : index
    %c0_3 = arith.constant 0 : index
    %2 = vector.load %arg0[%c1, %c0_2, %c0_3] : memref<3x2x128xf32, #tpu.memory_space<vmem>>, vector<1x2x128xf32>
    %3 = vector.shape_cast %2 : vector<1x2x128xf32> to vector<2x128xf32>
    %c2 = arith.constant 2 : index
    %c0_4 = arith.constant 0 : index
    %c0_5 = arith.constant 0 : index
    %4 = vector.load %arg0[%c2, %c0_4, %c0_5] : memref<3x2x128xf32, #tpu.memory_space<vmem>>, vector<1x2x128xf32>
    %5 = vector.shape_cast %4 : vector<1x2x128xf32> to vector<2x128xf32>
    %c0_6 = arith.constant 0 : index
    %c0_7 = arith.constant 0 : index
    %6 = vector.load %arg1[%c0_6, %c0_7] : memref<2x45xf32, #tpu.memory_space<vmem>>, vector<2x1xf32>
    %c0_8 = arith.constant 0 : index
    %c1_9 = arith.constant 1 : index
    %7 = vector.load %arg1[%c0_8, %c1_9] : memref<2x45xf32, #tpu.memory_space<vmem>>, vector<2x1xf32>
    %c0_10 = arith.constant 0 : index
    %c2_11 = arith.constant 2 : index
    %8 = vector.load %arg1[%c0_10, %c2_11] : memref<2x45xf32, #tpu.memory_space<vmem>>, vector<2x1xf32>
    %c0_12 = arith.constant 0 : index
    %c3 = arith.constant 3 : index
    %9 = vector.load %arg1[%c0_12, %c3] : memref<2x45xf32, #tpu.memory_space<vmem>>, vector<2x1xf32>
    %c0_13 = arith.constant 0 : index
    %c4 = arith.constant 4 : index
    %10 = vector.load %arg1[%c0_13, %c4] : memref<2x45xf32, #tpu.memory_space<vmem>>, vector<2x1xf32>
    %c0_14 = arith.constant 0 : index
    %c5 = arith.constant 5 : index
    %11 = vector.load %arg1[%c0_14, %c5] : memref<2x45xf32, #tpu.memory_space<vmem>>, vector<2x1xf32>
    %c0_15 = arith.constant 0 : index
    %c6 = arith.constant 6 : index
    %12 = vector.load %arg1[%c0_15, %c6] : memref<2x45xf32, #tpu.memory_space<vmem>>, vector<2x1xf32>
    %13 = vector.broadcast %11 : vector<2x1xf32> to vector<2x128xf32>
    %14 = arith.mulf %13, %5 : vector<2x128xf32>
    %15 = vector.broadcast %12 : vector<2x1xf32> to vector<2x128xf32>
    %16 = arith.mulf %15, %3 : vector<2x128xf32>
    %17 = arith.subf %14, %16 : vector<2x128xf32>
    %cst = arith.constant 2.000000e+00 : f32
    %18 = vector.broadcast %cst : f32 to vector<2x128xf32>
    %19 = arith.mulf %18, %17 : vector<2x128xf32>
    %20 = vector.broadcast %12 : vector<2x1xf32> to vector<2x128xf32>
    %21 = arith.mulf %20, %1 : vector<2x128xf32>
    %22 = vector.broadcast %10 : vector<2x1xf32> to vector<2x128xf32>
    %23 = arith.mulf %22, %5 : vector<2x128xf32>
    %24 = arith.subf %21, %23 : vector<2x128xf32>
    %cst_16 = arith.constant 2.000000e+00 : f32
    %25 = vector.broadcast %cst_16 : f32 to vector<2x128xf32>
    %26 = arith.mulf %25, %24 : vector<2x128xf32>
    %27 = vector.broadcast %10 : vector<2x1xf32> to vector<2x128xf32>
    %28 = arith.mulf %27, %3 : vector<2x128xf32>
    %29 = vector.broadcast %11 : vector<2x1xf32> to vector<2x128xf32>
    %30 = arith.mulf %29, %1 : vector<2x128xf32>
    %31 = arith.subf %28, %30 : vector<2x128xf32>
    %cst_17 = arith.constant 2.000000e+00 : f32
    %32 = vector.broadcast %cst_17 : f32 to vector<2x128xf32>
    %33 = arith.mulf %32, %31 : vector<2x128xf32>
    %34 = vector.broadcast %9 : vector<2x1xf32> to vector<2x128xf32>
    %35 = arith.mulf %34, %19 : vector<2x128xf32>
    %36 = arith.addf %1, %35 : vector<2x128xf32>
    %37 = vector.broadcast %11 : vector<2x1xf32> to vector<2x128xf32>
    %38 = arith.mulf %37, %33 : vector<2x128xf32>
    %39 = vector.broadcast %12 : vector<2x1xf32> to vector<2x128xf32>
    %40 = arith.mulf %39, %26 : vector<2x128xf32>
    %41 = arith.subf %38, %40 : vector<2x128xf32>
    %42 = arith.addf %36, %41 : vector<2x128xf32>
    %43 = vector.broadcast %9 : vector<2x1xf32> to vector<2x128xf32>
    %44 = arith.mulf %43, %26 : vector<2x128xf32>
    %45 = arith.addf %3, %44 : vector<2x128xf32>
    %46 = vector.broadcast %12 : vector<2x1xf32> to vector<2x128xf32>
    %47 = arith.mulf %46, %19 : vector<2x128xf32>
    %48 = vector.broadcast %10 : vector<2x1xf32> to vector<2x128xf32>
    %49 = arith.mulf %48, %33 : vector<2x128xf32>
    %50 = arith.subf %47, %49 : vector<2x128xf32>
    %51 = arith.addf %45, %50 : vector<2x128xf32>
    %52 = vector.broadcast %6 : vector<2x1xf32> to vector<2x128xf32>
    %53 = arith.mulf %52, %42 : vector<2x128xf32>
    %54 = vector.broadcast %7 : vector<2x1xf32> to vector<2x128xf32>
    %55 = arith.addf %53, %54 : vector<2x128xf32>
    %56 = vector.broadcast %6 : vector<2x1xf32> to vector<2x128xf32>
    %57 = arith.mulf %56, %51 : vector<2x128xf32>
    %58 = vector.broadcast %8 : vector<2x1xf32> to vector<2x128xf32>
    %59 = arith.addf %57, %58 : vector<2x128xf32>
    %c0_18 = arith.constant 0 : index
    %c0_19 = arith.constant 0 : index
    %c0_20 = arith.constant 0 : index
    %60 = vector.load %arg2[%c0_18, %c0_19, %c0_20] : memref<2x2x128xf32, #tpu.memory_space<vmem>>, vector<1x2x128xf32>
    %61 = vector.shape_cast %60 : vector<1x2x128xf32> to vector<2x128xf32>
    %62 = vector.shape_cast %55 : vector<2x128xf32> to vector<1x2x128xf32>
    tpu.vector_store %arg2[%c0_18, %c0_19, %c0_20], %62 {strides = array<i32>} : memref<2x2x128xf32, #tpu.memory_space<vmem>>, vector<1x2x128xf32>,
    %c1_21 = arith.constant 1 : index
    %c0_22 = arith.constant 0 : index
    %c0_23 = arith.constant 0 : index
    %63 = vector.load %arg2[%c1_21, %c0_22, %c0_23] : memref<2x2x128xf32, #tpu.memory_space<vmem>>, vector<1x2x128xf32>
    %64 = vector.shape_cast %63 : vector<1x2x128xf32> to vector<2x128xf32>
    %65 = vector.shape_cast %59 : vector<2x128xf32> to vector<1x2x128xf32>
    tpu.vector_store %arg2[%c1_21, %c0_22, %c0_23], %65 {strides = array<i32>} : memref<2x2x128xf32, #tpu.memory_space<vmem>>, vector<1x2x128xf32>,
    %66 = tpu.iota {dimensions = array<i32: 1>} : vector<2x128xi32>
    %cst_24 = arith.constant 0.000000e+00 : f32
    %67 = vector.broadcast %cst_24 : f32 to vector<2x128xf32>
    %c0_25 = arith.constant 0 : index
    %c7 = arith.constant 7 : index
    %68 = vector.load %arg1[%c0_25, %c7] : memref<2x45xf32, #tpu.memory_space<vmem>>, vector<2x1xf32>
    %c0_26 = arith.constant 0 : index
    %c8 = arith.constant 8 : index
    %69 = vector.load %arg1[%c0_26, %c8] : memref<2x45xf32, #tpu.memory_space<vmem>>, vector<2x1xf32>
    %70 = vector.broadcast %68 : vector<2x1xf32> to vector<2x128xf32>
    %71 = arith.subf %55, %70 : vector<2x128xf32>
    %72 = vector.broadcast %69 : vector<2x1xf32> to vector<2x128xf32>
    %73 = arith.subf %59, %72 : vector<2x128xf32>
    %74 = arith.mulf %71, %71 : vector<2x128xf32>
    %75 = arith.mulf %73, %73 : vector<2x128xf32>
    %76 = arith.addf %74, %75 : vector<2x128xf32>
    %c0_27 = arith.constant 0 : index
    %c9 = arith.constant 9 : index
    %77 = vector.load %arg1[%c0_27, %c9] : memref<2x45xf32, #tpu.memory_space<vmem>>, vector<2x1xf32>
    %c0_28 = arith.constant 0 : index
    %c10 = arith.constant 10 : index
    %78 = vector.load %arg1[%c0_28, %c10] : memref<2x45xf32, #tpu.memory_space<vmem>>, vector<2x1xf32>
    %79 = vector.broadcast %77 : vector<2x1xf32> to vector<2x128xf32>
    %80 = arith.subf %55, %79 : vector<2x128xf32>
    %81 = vector.broadcast %78 : vector<2x1xf32> to vector<2x128xf32>
    %82 = arith.subf %59, %81 : vector<2x128xf32>
    %83 = arith.mulf %80, %80 : vector<2x128xf32>
    %84 = arith.mulf %82, %82 : vector<2x128xf32>
    %85 = arith.addf %83, %84 : vector<2x128xf32>
    %86 = arith.minimumf %76, %85 : vector<2x128xf32>
    %c0_29 = arith.constant 0 : index
    %c11 = arith.constant 11 : index
    %87 = vector.load %arg1[%c0_29, %c11] : memref<2x45xf32, #tpu.memory_space<vmem>>, vector<2x1xf32>
    %c0_30 = arith.constant 0 : index
    %c12 = arith.constant 12 : index
    %88 = vector.load %arg1[%c0_30, %c12] : memref<2x45xf32, #tpu.memory_space<vmem>>, vector<2x1xf32>
    %89 = vector.broadcast %87 : vector<2x1xf32> to vector<2x128xf32>
    %90 = arith.subf %55, %89 : vector<2x128xf32>
    %91 = vector.broadcast %88 : vector<2x1xf32> to vector<2x128xf32>
    %92 = arith.subf %59, %91 : vector<2x128xf32>
    %93 = arith.mulf %90, %90 : vector<2x128xf32>
    %94 = arith.mulf %92, %92 : vector<2x128xf32>
    %95 = arith.addf %93, %94 : vector<2x128xf32>
    %96 = arith.minimumf %86, %95 : vector<2x128xf32>
    %c0_31 = arith.constant 0 : index
    %c13 = arith.constant 13 : index
    %97 = vector.load %arg1[%c0_31, %c13] : memref<2x45xf32, #tpu.memory_space<vmem>>, vector<2x1xf32>
    %c0_32 = arith.constant 0 : index
    %c14 = arith.constant 14 : index
    %98 = vector.load %arg1[%c0_32, %c14] : memref<2x45xf32, #tpu.memory_space<vmem>>, vector<2x1xf32>
    %99 = vector.broadcast %97 : vector<2x1xf32> to vector<2x128xf32>
    %100 = arith.subf %55, %99 : vector<2x128xf32>
    %101 = vector.broadcast %98 : vector<2x1xf32> to vector<2x128xf32>
    %102 = arith.subf %59, %101 : vector<2x128xf32>
    %103 = arith.mulf %100, %100 : vector<2x128xf32>
    %104 = arith.mulf %102, %102 : vector<2x128xf32>
    %105 = arith.addf %103, %104 : vector<2x128xf32>
    %106 = arith.minimumf %96, %105 : vector<2x128xf32>
    %c0_33 = arith.constant 0 : index
    %c15 = arith.constant 15 : index
    %107 = vector.load %arg1[%c0_33, %c15] : memref<2x45xf32, #tpu.memory_space<vmem>>, vector<2x1xf32>
    %c0_34 = arith.constant 0 : index
    %c16 = arith.constant 16 : index
    %108 = vector.load %arg1[%c0_34, %c16] : memref<2x45xf32, #tpu.memory_space<vmem>>, vector<2x1xf32>
    %109 = vector.broadcast %107 : vector<2x1xf32> to vector<2x128xf32>
    %110 = arith.subf %55, %109 : vector<2x128xf32>
    %111 = vector.broadcast %108 : vector<2x1xf32> to vector<2x128xf32>
    %112 = arith.subf %59, %111 : vector<2x128xf32>
    %113 = arith.mulf %110, %110 : vector<2x128xf32>
    %114 = arith.mulf %112, %112 : vector<2x128xf32>
    %115 = arith.addf %113, %114 : vector<2x128xf32>
    %116 = arith.minimumf %106, %115 : vector<2x128xf32>
    %c0_35 = arith.constant 0 : index
    %c17 = arith.constant 17 : index
    %117 = vector.load %arg1[%c0_35, %c17] : memref<2x45xf32, #tpu.memory_space<vmem>>, vector<2x1xf32>
    %c0_36 = arith.constant 0 : index
    %c18 = arith.constant 18 : index
    %118 = vector.load %arg1[%c0_36, %c18] : memref<2x45xf32, #tpu.memory_space<vmem>>, vector<2x1xf32>
    %119 = vector.broadcast %117 : vector<2x1xf32> to vector<2x128xf32>
    %120 = arith.subf %55, %119 : vector<2x128xf32>
    %121 = vector.broadcast %118 : vector<2x1xf32> to vector<2x128xf32>
    %122 = arith.subf %59, %121 : vector<2x128xf32>
    %123 = arith.mulf %120, %120 : vector<2x128xf32>
    %124 = arith.mulf %122, %122 : vector<2x128xf32>
    %125 = arith.addf %123, %124 : vector<2x128xf32>
    %126 = arith.minimumf %116, %125 : vector<2x128xf32>
    %c0_37 = arith.constant 0 : index
    %c19 = arith.constant 19 : index
    %127 = vector.load %arg1[%c0_37, %c19] : memref<2x45xf32, #tpu.memory_space<vmem>>, vector<2x1xf32>
    %c0_38 = arith.constant 0 : index
    %c20 = arith.constant 20 : index
    %128 = vector.load %arg1[%c0_38, %c20] : memref<2x45xf32, #tpu.memory_space<vmem>>, vector<2x1xf32>
    %129 = vector.broadcast %127 : vector<2x1xf32> to vector<2x128xf32>
    %130 = arith.subf %55, %129 : vector<2x128xf32>
    %131 = vector.broadcast %128 : vector<2x1xf32> to vector<2x128xf32>
    %132 = arith.subf %59, %131 : vector<2x128xf32>
    %133 = arith.mulf %130, %130 : vector<2x128xf32>
    %134 = arith.mulf %132, %132 : vector<2x128xf32>
    %135 = arith.addf %133, %134 : vector<2x128xf32>
    %136 = arith.minimumf %126, %135 : vector<2x128xf32>
    %c0_39 = arith.constant 0 : index
    %c21 = arith.constant 21 : index
    %137 = vector.load %arg1[%c0_39, %c21] : memref<2x45xf32, #tpu.memory_space<vmem>>, vector<2x1xf32>
    %c0_40 = arith.constant 0 : index
    %c22 = arith.constant 22 : index
    %138 = vector.load %arg1[%c0_40, %c22] : memref<2x45xf32, #tpu.memory_space<vmem>>, vector<2x1xf32>
    %139 = vector.broadcast %137 : vector<2x1xf32> to vector<2x128xf32>
    %140 = arith.subf %55, %139 : vector<2x128xf32>
    %141 = vector.broadcast %138 : vector<2x1xf32> to vector<2x128xf32>
    %142 = arith.subf %59, %141 : vector<2x128xf32>
    %143 = arith.mulf %140, %140 : vector<2x128xf32>
    %144 = arith.mulf %142, %142 : vector<2x128xf32>
    %145 = arith.addf %143, %144 : vector<2x128xf32>
    %146 = arith.minimumf %136, %145 : vector<2x128xf32>
    %c0_41 = arith.constant 0 : index
    %c23 = arith.constant 23 : index
    %147 = vector.load %arg1[%c0_41, %c23] : memref<2x45xf32, #tpu.memory_space<vmem>>, vector<2x1xf32>
    %c0_42 = arith.constant 0 : index
    %c24 = arith.constant 24 : index
    %148 = vector.load %arg1[%c0_42, %c24] : memref<2x45xf32, #tpu.memory_space<vmem>>, vector<2x1xf32>
    %149 = vector.broadcast %147 : vector<2x1xf32> to vector<2x128xf32>
    %150 = arith.subf %55, %149 : vector<2x128xf32>
    %151 = vector.broadcast %148 : vector<2x1xf32> to vector<2x128xf32>
    %152 = arith.subf %59, %151 : vector<2x128xf32>
    %153 = arith.mulf %150, %150 : vector<2x128xf32>
    %154 = arith.mulf %152, %152 : vector<2x128xf32>
    %155 = arith.addf %153, %154 : vector<2x128xf32>
    %156 = arith.minimumf %146, %155 : vector<2x128xf32>
    %c0_43 = arith.constant 0 : index
    %c25 = arith.constant 25 : index
    %157 = vector.load %arg1[%c0_43, %c25] : memref<2x45xf32, #tpu.memory_space<vmem>>, vector<2x1xf32>
    %c0_44 = arith.constant 0 : index
    %c26 = arith.constant 26 : index
    %158 = vector.load %arg1[%c0_44, %c26] : memref<2x45xf32, #tpu.memory_space<vmem>>, vector<2x1xf32>
    %159 = vector.broadcast %157 : vector<2x1xf32> to vector<2x128xf32>
    %160 = arith.subf %55, %159 : vector<2x128xf32>
    %161 = vector.broadcast %158 : vector<2x1xf32> to vector<2x128xf32>
    %162 = arith.subf %59, %161 : vector<2x128xf32>
    %163 = arith.mulf %160, %160 : vector<2x128xf32>
    %164 = arith.mulf %162, %162 : vector<2x128xf32>
    %165 = arith.addf %163, %164 : vector<2x128xf32>
    %166 = arith.minimumf %156, %165 : vector<2x128xf32>
    %c0_i32 = arith.constant 0 : i32
    %167 = vector.broadcast %c0_i32 : i32 to vector<2x128xi32>
    %168 = arith.cmpi sge, %66, %167 : vector<2x128xi32>
    %c12_i32 = arith.constant 12 : i32
    %169 = vector.broadcast %c12_i32 : i32 to vector<2x128xi32>
    %170 = arith.cmpi slt, %66, %169 : vector<2x128xi32>
    %171 = arith.andi %168, %170 : vector<2x128xi1>
    %172 = arith.select %171, %166, %67 : vector<2x128xi1>, vector<2x128xf32>
    %c0_45 = arith.constant 0 : index
    %c27 = arith.constant 27 : index
    %173 = vector.load %arg1[%c0_45, %c27] : memref<2x45xf32, #tpu.memory_space<vmem>>, vector<2x1xf32>
    %c0_46 = arith.constant 0 : index
    %c28 = arith.constant 28 : index
    %174 = vector.load %arg1[%c0_46, %c28] : memref<2x45xf32, #tpu.memory_space<vmem>>, vector<2x1xf32>
    %175 = vector.broadcast %173 : vector<2x1xf32> to vector<2x128xf32>
    %176 = arith.subf %55, %175 : vector<2x128xf32>
    %177 = vector.broadcast %174 : vector<2x1xf32> to vector<2x128xf32>
    %178 = arith.subf %59, %177 : vector<2x128xf32>
    %179 = arith.mulf %176, %176 : vector<2x128xf32>
    %180 = arith.mulf %178, %178 : vector<2x128xf32>
    %181 = arith.addf %179, %180 : vector<2x128xf32>
    %c0_47 = arith.constant 0 : index
    %c29 = arith.constant 29 : index
    %182 = vector.load %arg1[%c0_47, %c29] : memref<2x45xf32, #tpu.memory_space<vmem>>, vector<2x1xf32>
    %c0_48 = arith.constant 0 : index
    %c30 = arith.constant 30 : index
    %183 = vector.load %arg1[%c0_48, %c30] : memref<2x45xf32, #tpu.memory_space<vmem>>, vector<2x1xf32>
    %184 = vector.broadcast %182 : vector<2x1xf32> to vector<2x128xf32>
    %185 = arith.subf %55, %184 : vector<2x128xf32>
    %186 = vector.broadcast %183 : vector<2x1xf32> to vector<2x128xf32>
    %187 = arith.subf %59, %186 : vector<2x128xf32>
    %188 = arith.mulf %185, %185 : vector<2x128xf32>
    %189 = arith.mulf %187, %187 : vector<2x128xf32>
    %190 = arith.addf %188, %189 : vector<2x128xf32>
    %191 = arith.minimumf %181, %190 : vector<2x128xf32>
    %c0_49 = arith.constant 0 : index
    %c31 = arith.constant 31 : index
    %192 = vector.load %arg1[%c0_49, %c31] : memref<2x45xf32, #tpu.memory_space<vmem>>, vector<2x1xf32>
    %c0_50 = arith.constant 0 : index
    %c32 = arith.constant 32 : index
    %193 = vector.load %arg1[%c0_50, %c32] : memref<2x45xf32, #tpu.memory_space<vmem>>, vector<2x1xf32>
    %194 = vector.broadcast %192 : vector<2x1xf32> to vector<2x128xf32>
    %195 = arith.subf %55, %194 : vector<2x128xf32>
    %196 = vector.broadcast %193 : vector<2x1xf32> to vector<2x128xf32>
    %197 = arith.subf %59, %196 : vector<2x128xf32>
    %198 = arith.mulf %195, %195 : vector<2x128xf32>
    %199 = arith.mulf %197, %197 : vector<2x128xf32>
    %200 = arith.addf %198, %199 : vector<2x128xf32>
    %201 = arith.minimumf %191, %200 : vector<2x128xf32>
    %c0_51 = arith.constant 0 : index
    %c33 = arith.constant 33 : index
    %202 = vector.load %arg1[%c0_51, %c33] : memref<2x45xf32, #tpu.memory_space<vmem>>, vector<2x1xf32>
    %c0_52 = arith.constant 0 : index
    %c34 = arith.constant 34 : index
    %203 = vector.load %arg1[%c0_52, %c34] : memref<2x45xf32, #tpu.memory_space<vmem>>, vector<2x1xf32>
    %204 = vector.broadcast %202 : vector<2x1xf32> to vector<2x128xf32>
    %205 = arith.subf %55, %204 : vector<2x128xf32>
    %206 = vector.broadcast %203 : vector<2x1xf32> to vector<2x128xf32>
    %207 = arith.subf %59, %206 : vector<2x128xf32>
    %208 = arith.mulf %205, %205 : vector<2x128xf32>
    %209 = arith.mulf %207, %207 : vector<2x128xf32>
    %210 = arith.addf %208, %209 : vector<2x128xf32>
    %211 = arith.minimumf %201, %210 : vector<2x128xf32>
    %c0_53 = arith.constant 0 : index
    %c35 = arith.constant 35 : index
    %212 = vector.load %arg1[%c0_53, %c35] : memref<2x45xf32, #tpu.memory_space<vmem>>, vector<2x1xf32>
    %c0_54 = arith.constant 0 : index
    %c36 = arith.constant 36 : index
    %213 = vector.load %arg1[%c0_54, %c36] : memref<2x45xf32, #tpu.memory_space<vmem>>, vector<2x1xf32>
    %214 = vector.broadcast %212 : vector<2x1xf32> to vector<2x128xf32>
    %215 = arith.subf %55, %214 : vector<2x128xf32>
    %216 = vector.broadcast %213 : vector<2x1xf32> to vector<2x128xf32>
    %217 = arith.subf %59, %216 : vector<2x128xf32>
    %218 = arith.mulf %215, %215 : vector<2x128xf32>
    %219 = arith.mulf %217, %217 : vector<2x128xf32>
    %220 = arith.addf %218, %219 : vector<2x128xf32>
    %221 = arith.minimumf %211, %220 : vector<2x128xf32>
    %c0_55 = arith.constant 0 : index
    %c37 = arith.constant 37 : index
    %222 = vector.load %arg1[%c0_55, %c37] : memref<2x45xf32, #tpu.memory_space<vmem>>, vector<2x1xf32>
    %c0_56 = arith.constant 0 : index
    %c38 = arith.constant 38 : index
    %223 = vector.load %arg1[%c0_56, %c38] : memref<2x45xf32, #tpu.memory_space<vmem>>, vector<2x1xf32>
    %224 = vector.broadcast %222 : vector<2x1xf32> to vector<2x128xf32>
    %225 = arith.subf %55, %224 : vector<2x128xf32>
    %226 = vector.broadcast %223 : vector<2x1xf32> to vector<2x128xf32>
    %227 = arith.subf %59, %226 : vector<2x128xf32>
    %228 = arith.mulf %225, %225 : vector<2x128xf32>
    %229 = arith.mulf %227, %227 : vector<2x128xf32>
    %230 = arith.addf %228, %229 : vector<2x128xf32>
    %231 = arith.minimumf %221, %230 : vector<2x128xf32>
    %c0_57 = arith.constant 0 : index
    %c39 = arith.constant 39 : index
    %232 = vector.load %arg1[%c0_57, %c39] : memref<2x45xf32, #tpu.memory_space<vmem>>, vector<2x1xf32>
    %c0_58 = arith.constant 0 : index
    %c40 = arith.constant 40 : index
    %233 = vector.load %arg1[%c0_58, %c40] : memref<2x45xf32, #tpu.memory_space<vmem>>, vector<2x1xf32>
    %234 = vector.broadcast %232 : vector<2x1xf32> to vector<2x128xf32>
    %235 = arith.subf %55, %234 : vector<2x128xf32>
    %236 = vector.broadcast %233 : vector<2x1xf32> to vector<2x128xf32>
    %237 = arith.subf %59, %236 : vector<2x128xf32>
    %238 = arith.mulf %235, %235 : vector<2x128xf32>
    %239 = arith.mulf %237, %237 : vector<2x128xf32>
    %240 = arith.addf %238, %239 : vector<2x128xf32>
    %241 = arith.minimumf %231, %240 : vector<2x128xf32>
    %c0_59 = arith.constant 0 : index
    %c41 = arith.constant 41 : index
    %242 = vector.load %arg1[%c0_59, %c41] : memref<2x45xf32, #tpu.memory_space<vmem>>, vector<2x1xf32>
    %c0_60 = arith.constant 0 : index
    %c42 = arith.constant 42 : index
    %243 = vector.load %arg1[%c0_60, %c42] : memref<2x45xf32, #tpu.memory_space<vmem>>, vector<2x1xf32>
    %244 = vector.broadcast %242 : vector<2x1xf32> to vector<2x128xf32>
    %245 = arith.subf %55, %244 : vector<2x128xf32>
    %246 = vector.broadcast %243 : vector<2x1xf32> to vector<2x128xf32>
    %247 = arith.subf %59, %246 : vector<2x128xf32>
    %248 = arith.mulf %245, %245 : vector<2x128xf32>
    %249 = arith.mulf %247, %247 : vector<2x128xf32>
    %250 = arith.addf %248, %249 : vector<2x128xf32>
    %251 = arith.minimumf %241, %250 : vector<2x128xf32>
    %c0_61 = arith.constant 0 : index
    %c43 = arith.constant 43 : index
    %252 = vector.load %arg1[%c0_61, %c43] : memref<2x45xf32, #tpu.memory_space<vmem>>, vector<2x1xf32>
    %c0_62 = arith.constant 0 : index
    %c44 = arith.constant 44 : index
    %253 = vector.load %arg1[%c0_62, %c44] : memref<2x45xf32, #tpu.memory_space<vmem>>, vector<2x1xf32>
    %254 = vector.broadcast %252 : vector<2x1xf32> to vector<2x128xf32>
    %255 = arith.subf %55, %254 : vector<2x128xf32>
    %256 = vector.broadcast %253 : vector<2x1xf32> to vector<2x128xf32>
    %257 = arith.subf %59, %256 : vector<2x128xf32>
    %258 = arith.mulf %255, %255 : vector<2x128xf32>
    %259 = arith.mulf %257, %257 : vector<2x128xf32>
    %260 = arith.addf %258, %259 : vector<2x128xf32>
    %261 = arith.minimumf %251, %260 : vector<2x128xf32>
    %c12_i32_63 = arith.constant 12 : i32
    %262 = vector.broadcast %c12_i32_63 : i32 to vector<2x128xi32>
    %263 = arith.cmpi sge, %66, %262 : vector<2x128xi32>
    %c24_i32 = arith.constant 24 : i32
    %264 = vector.broadcast %c24_i32 : i32 to vector<2x128xi32>
    %265 = arith.cmpi slt, %66, %264 : vector<2x128xi32>
    %266 = arith.andi %263, %265 : vector<2x128xi1>
    %267 = arith.select %266, %261, %172 : vector<2x128xi1>, vector<2x128xf32>
    %cst_64 = arith.constant dense<0.000000e+00> : vector<2xf32>
    %268 = vector.multi_reduction <add>, %267, %cst_64 [1] : vector<2x128xf32> to vector<2xf32>
    %269 = vector.shape_cast %268 : vector<2xf32> to vector<2x1xf32>
    %cst_65 = arith.constant 0.020833334 : f32
    %270 = vector.broadcast %cst_65 : f32 to vector<2x1xf32>
    %271 = arith.mulf %269, %270 : vector<2x1xf32>
    %c0_66 = arith.constant 0 : index
    %c0_67 = arith.constant 0 : index
    %272 = vector.load %arg3[%c0_66, %c0_67] : memref<2x1xf32, #tpu.memory_space<vmem>>, vector<2x1xf32>
    tpu.vector_store %arg3[%c0_66, %c0_67], %271 {strides = array<i32>} : memref<2x1xf32, #tpu.memory_space<vmem>>, vector<2x1xf32>,
    return
  }
}

</mosaic_0001>

<llo_original>
// kernel: _forward.1
$region0: #{_forward.1}
  #allocation0 [shape = 'u32[]', space=smem, size = 0x4, offset = 0x4, fixed_abs, tag = 'smem constant byte address 0x4 - core index']
  #allocation1 [shape = 'u32[144,128]{1,0:T(1,128)}', space=vmem, size = 0x12000, scoped, tag = 'internal scratch']
  %s0 = inlined_call_operand.vmem [shape: f32[3,2,128], index: 0, kind: input, shape index: {}]
  %s1 = inlined_call_operand.vmem [shape: f32[2,45], index: 1, kind: input, shape index: {}]
  %s2 = inlined_call_operand.vmem [shape: f32[2,2,128], index: 2, kind: output, shape index: {0}]
  %s3 = inlined_call_operand.vmem [shape: f32[2,1], index: 3, kind: output, shape index: {1}]
  %4 = xla_tuple %s2, %s3
  %s5 = sld [smem:[#allocation0]]
  $region26: #{_forward.1} parent=0
    _
  %s7 = ssub.s32 1, %s5
  %s8 = scalar_select 0, %s7, %s5
  // Predicated region
  $region2: #{_forward.1} parent=0 // pred_check
    _
  $region3: #{_forward.1} parent=0 // pred_check_branch
    %10 = sbr.rel (0) target = $region5
  $region4: #{_forward.1} parent=0 // pred_region
    _
  $region5: #{_forward.1} parent=0 // pred_fallthru
    _
  // Predicated region
  $region6: #{_forward.1} parent=0 // pred_check
    _
  $region7: #{_forward.1} parent=0 // pred_check_branch
    %12 = sbr.rel (0) target = $region9
  $region8: #{_forward.1} parent=0 // pred_region
    _
  $region9: #{_forward.1} parent=0 // pred_fallthru
    _
  %v13 = vld [vmem:[%s0] sm:$0x3]
  %s14 = scalar_lea.vmem %s0, 2
  %v15 = vld [vmem:[%s14] sm:$0x3]
  %s16 = scalar_lea.vmem %s0, 4
  %v17 = vld [vmem:[%s16] sm:$0x3]
  %v18 = vld [vmem:[%s1] sm:$0x3]
  %20 = vset.pattern.permute.xlu0 5
  %21 = vperm.xlu0 %20, %v18
  %v22 = vpop.permute.xlu0 %21
  %v24 = vmul.f32 %v22, %v17
  %25 = vset.pattern.permute.xlu0 6
  %26 = vperm.xlu0 %25, %v18
  %v27 = vpop.permute.xlu0 %26
  %v29 = vmul.f32 %v27, %v15
  %v30 = vsub.f32 %v24, %v29
  %v31 = vmul.f32 %v30, 2.0
  %v32 = vmul.f32 %v27, %v13
  %33 = vset.pattern.permute.xlu0 4
  %34 = vperm.xlu0 %33, %v18
  %v35 = vpop.permute.xlu0 %34
  %v37 = vmul.f32 %v35, %v17
  %v38 = vsub.f32 %v32, %v37
  %v39 = vmul.f32 %v38, 2.0
  %v40 = vmul.f32 %v35, %v15
  %v41 = vmul.f32 %v22, %v13
  %v42 = vsub.f32 %v40, %v41
  %v43 = vmul.f32 %v42, 2.0
  %44 = vset.pattern.permute.xlu0 3
  %45 = vperm.xlu0 %44, %v18
  %v46 = vpop.permute.xlu0 %45
  %v48 = vmul.f32 %v46, %v31
  %v49 = vadd.f32 %v13, %v48
  %v50 = vmul.f32 %v22, %v43
  %v51 = vmul.f32 %v27, %v39
  %v52 = vsub.f32 %v50, %v51
  %v53 = vadd.f32 %v49, %v52
  %v54 = vmul.f32 %v46, %v39
  %v55 = vadd.f32 %v15, %v54
  %v56 = vmul.f32 %v27, %v31
  %v57 = vmul.f32 %v35, %v43
  %v58 = vsub.f32 %v56, %v57
  %v59 = vadd.f32 %v55, %v58
  %60 = vset.pattern.permute.xlu0 0
  %61 = vperm.xlu0 %60, %v18
  %v62 = vpop.permute.xlu0 %61
  %v64 = vmul.f32 %v62, %v53
  %65 = vset.pattern.permute.xlu0 1
  %66 = vperm.xlu0 %65, %v18
  %v67 = vpop.permute.xlu0 %66
  %v69 = vadd.f32 %v64, %v67
  %v70 = vmul.f32 %v62, %v59
  %71 = vset.pattern.permute.xlu0 2
  %72 = vperm.xlu0 %71, %v18
  %v73 = vpop.permute.xlu0 %72
  %v75 = vadd.f32 %v70, %v73
  %76 = vst [vmem:[%s2] sm:$0x3] %v69
  %s77 = scalar_lea.vmem %s2, 2
  %78 = vst [vmem:[%s77] sm:$0x3] %v75
  %v79 = vlaneseq
  %v80 = vand.u32 %v79, 127
  %v81 = vld [vmem:[%s1] sm:$0x3]
  %83 = vset.pattern.permute.xlu0 7
  %84 = vperm.xlu0 %83, %v81
  %v85 = vpop.permute.xlu0 %84
  %v87 = vsub.f32 %v69, %v85
  %88 = vset.pattern.permute.xlu0 8
  %89 = vperm.xlu0 %88, %v81
  %v90 = vpop.permute.xlu0 %89
  %v92 = vsub.f32 %v75, %v90
  %v93 = vmul.f32 %v87, %v87
  %v94 = vmul.f32 %v92, %v92
  %v95 = vadd.f32 %v93, %v94
  %96 = vset.pattern.permute.xlu0 9
  %97 = vperm.xlu0 %96, %v81
  %v98 = vpop.permute.xlu0 %97
  %v100 = vsub.f32 %v69, %v98
  %101 = vset.pattern.permute.xlu0 10
  %102 = vperm.xlu0 %101, %v81
  %v103 = vpop.permute.xlu0 %102
  %v105 = vsub.f32 %v75, %v103
  %v106 = vmul.f32 %v100, %v100
  %v107 = vmul.f32 %v105, %v105
  %v108 = vadd.f32 %v106, %v107
  %v109 = vmin.f32 %v95, %v108
  %110 = vset.pattern.permute.xlu0 11
  %111 = vperm.xlu0 %110, %v81
  %v112 = vpop.permute.xlu0 %111
  %v114 = vsub.f32 %v69, %v112
  %115 = vset.pattern.permute.xlu0 12
  %116 = vperm.xlu0 %115, %v81
  %v117 = vpop.permute.xlu0 %116
  %v119 = vsub.f32 %v75, %v117
  %v120 = vmul.f32 %v114, %v114
  %v121 = vmul.f32 %v119, %v119
  %v122 = vadd.f32 %v120, %v121
  %v123 = vmin.f32 %v109, %v122
  %124 = vset.pattern.permute.xlu0 13
  %125 = vperm.xlu0 %124, %v81
  %v126 = vpop.permute.xlu0 %125
  %v128 = vsub.f32 %v69, %v126
  %129 = vset.pattern.permute.xlu0 14
  %130 = vperm.xlu0 %129, %v81
  %v131 = vpop.permute.xlu0 %130
  %v133 = vsub.f32 %v75, %v131
  %v134 = vmul.f32 %v128, %v128
  %v135 = vmul.f32 %v133, %v133
  %v136 = vadd.f32 %v134, %v135
  %v137 = vmin.f32 %v123, %v136
  %138 = vset.pattern.permute.xlu0 15
  %139 = vperm.xlu0 %138, %v81
  %v140 = vpop.permute.xlu0 %139
  %v142 = vsub.f32 %v69, %v140
  %143 = vset.pattern.permute.xlu0 16
  %144 = vperm.xlu0 %143, %v81
  %v145 = vpop.permute.xlu0 %144
  %v147 = vsub.f32 %v75, %v145
  %v148 = vmul.f32 %v142, %v142
  %v149 = vmul.f32 %v147, %v147
  %v150 = vadd.f32 %v148, %v149
  %v151 = vmin.f32 %v137, %v150
  %152 = vset.pattern.permute.xlu0 17
  %153 = vperm.xlu0 %152, %v81
  %v154 = vpop.permute.xlu0 %153
  %v156 = vsub.f32 %v69, %v154
  %157 = vset.pattern.permute.xlu0 18
  %158 = vperm.xlu0 %157, %v81
  %v159 = vpop.permute.xlu0 %158
  %v161 = vsub.f32 %v75, %v159
  %v162 = vmul.f32 %v156, %v156
  %v163 = vmul.f32 %v161, %v161
  %v164 = vadd.f32 %v162, %v163
  %v165 = vmin.f32 %v151, %v164
  %166 = vset.pattern.permute.xlu0 19
  %167 = vperm.xlu0 %166, %v81
  %v168 = vpop.permute.xlu0 %167
  %v170 = vsub.f32 %v69, %v168
  %171 = vset.pattern.permute.xlu0 20
  %172 = vperm.xlu0 %171, %v81
  %v173 = vpop.permute.xlu0 %172
  %v175 = vsub.f32 %v75, %v173
  %v176 = vmul.f32 %v170, %v170
  %v177 = vmul.f32 %v175, %v175
  %v178 = vadd.f32 %v176, %v177
  %v179 = vmin.f32 %v165, %v178
  %180 = vset.pattern.permute.xlu0 21
  %181 = vperm.xlu0 %180, %v81
  %v182 = vpop.permute.xlu0 %181
  %v184 = vsub.f32 %v69, %v182
  %185 = vset.pattern.permute.xlu0 22
  %186 = vperm.xlu0 %185, %v81
  %v187 = vpop.permute.xlu0 %186
  %v189 = vsub.f32 %v75, %v187
  %v190 = vmul.f32 %v184, %v184
  %v191 = vmul.f32 %v189, %v189
  %v192 = vadd.f32 %v190, %v191
  %v193 = vmin.f32 %v179, %v192
  %194 = vset.pattern.permute.xlu0 23
  %195 = vperm.xlu0 %194, %v81
  %v196 = vpop.permute.xlu0 %195
  %v198 = vsub.f32 %v69, %v196
  %199 = vset.pattern.permute.xlu0 24
  %200 = vperm.xlu0 %199, %v81
  %v201 = vpop.permute.xlu0 %200
  %v203 = vsub.f32 %v75, %v201
  %v204 = vmul.f32 %v198, %v198
  %v205 = vmul.f32 %v203, %v203
  %v206 = vadd.f32 %v204, %v205
  %v207 = vmin.f32 %v193, %v206
  %208 = vset.pattern.permute.xlu0 25
  %209 = vperm.xlu0 %208, %v81
  %v210 = vpop.permute.xlu0 %209
  %v212 = vsub.f32 %v69, %v210
  %213 = vset.pattern.permute.xlu0 26
  %214 = vperm.xlu0 %213, %v81
  %v215 = vpop.permute.xlu0 %214
  %v217 = vsub.f32 %v75, %v215
  %v218 = vmul.f32 %v212, %v212
  %v219 = vmul.f32 %v217, %v217
  %v220 = vadd.f32 %v218, %v219
  %v221 = vmin.f32 %v207, %v220
  %vm222 = vcmp.ge.s32.totalorder %v80, 0
  %vm223 = vcmp.lt.s32.totalorder %v80, 12
  %vm224 = vmand %vm222, %vm223
  %v225 = vsel %vm224, %v221, 0.0
  %226 = vset.pattern.permute.xlu0 27
  %227 = vperm.xlu0 %226, %v81
  %v228 = vpop.permute.xlu0 %227
  %v230 = vsub.f32 %v69, %v228
  %231 = vset.pattern.permute.xlu0 28
  %232 = vperm.xlu0 %231, %v81
  %v233 = vpop.permute.xlu0 %232
  %v235 = vsub.f32 %v75, %v233
  %v236 = vmul.f32 %v230, %v230
  %v237 = vmul.f32 %v235, %v235
  %v238 = vadd.f32 %v236, %v237
  %239 = vset.pattern.permute.xlu0 29
  %240 = vperm.xlu0 %239, %v81
  %v241 = vpop.permute.xlu0 %240
  %v243 = vsub.f32 %v69, %v241
  %244 = vset.pattern.permute.xlu0 30
  %245 = vperm.xlu0 %244, %v81
  %v246 = vpop.permute.xlu0 %245
  %v248 = vsub.f32 %v75, %v246
  %v249 = vmul.f32 %v243, %v243
  %v250 = vmul.f32 %v248, %v248
  %v251 = vadd.f32 %v249, %v250
  %v252 = vmin.f32 %v238, %v251
  %253 = vset.pattern.permute.xlu0 31
  %254 = vperm.xlu0 %253, %v81
  %v255 = vpop.permute.xlu0 %254
  %v257 = vsub.f32 %v69, %v255
  %258 = vset.pattern.permute.xlu0 32
  %259 = vperm.xlu0 %258, %v81
  %v260 = vpop.permute.xlu0 %259
  %v262 = vsub.f32 %v75, %v260
  %v263 = vmul.f32 %v257, %v257
  %v264 = vmul.f32 %v262, %v262
  %v265 = vadd.f32 %v263, %v264
  %v266 = vmin.f32 %v252, %v265
  %267 = vset.pattern.permute.xlu0 33
  %268 = vperm.xlu0 %267, %v81
  %v269 = vpop.permute.xlu0 %268
  %v271 = vsub.f32 %v69, %v269
  %272 = vset.pattern.permute.xlu0 34
  %273 = vperm.xlu0 %272, %v81
  %v274 = vpop.permute.xlu0 %273
  %v276 = vsub.f32 %v75, %v274
  %v277 = vmul.f32 %v271, %v271
  %v278 = vmul.f32 %v276, %v276
  %v279 = vadd.f32 %v277, %v278
  %v280 = vmin.f32 %v266, %v279
  %281 = vset.pattern.permute.xlu0 35
  %282 = vperm.xlu0 %281, %v81
  %v283 = vpop.permute.xlu0 %282
  %v285 = vsub.f32 %v69, %v283
  %286 = vset.pattern.permute.xlu0 36
  %287 = vperm.xlu0 %286, %v81
  %v288 = vpop.permute.xlu0 %287
  %v290 = vsub.f32 %v75, %v288
  %v291 = vmul.f32 %v285, %v285
  %v292 = vmul.f32 %v290, %v290
  %v293 = vadd.f32 %v291, %v292
  %v294 = vmin.f32 %v280, %v293
  %295 = vset.pattern.permute.xlu0 37
  %296 = vperm.xlu0 %295, %v81
  %v297 = vpop.permute.xlu0 %296
  %v299 = vsub.f32 %v69, %v297
  %300 = vset.pattern.permute.xlu0 38
  %301 = vperm.xlu0 %300, %v81
  %v302 = vpop.permute.xlu0 %301
  %v304 = vsub.f32 %v75, %v302
  %v305 = vmul.f32 %v299, %v299
  %v306 = vmul.f32 %v304, %v304
  %v307 = vadd.f32 %v305, %v306
  %v308 = vmin.f32 %v294, %v307
  %309 = vset.pattern.permute.xlu0 39
  %310 = vperm.xlu0 %309, %v81
  %v311 = vpop.permute.xlu0 %310
  %v313 = vsub.f32 %v69, %v311
  %314 = vset.pattern.permute.xlu0 40
  %315 = vperm.xlu0 %314, %v81
  %v316 = vpop.permute.xlu0 %315
  %v318 = vsub.f32 %v75, %v316
  %v319 = vmul.f32 %v313, %v313
  %v320 = vmul.f32 %v318, %v318
  %v321 = vadd.f32 %v319, %v320
  %v322 = vmin.f32 %v308, %v321
  %323 = vset.pattern.permute.xlu0 41
  %324 = vperm.xlu0 %323, %v81
  %v325 = vpop.permute.xlu0 %324
  %v327 = vsub.f32 %v69, %v325
  %328 = vset.pattern.permute.xlu0 42
  %329 = vperm.xlu0 %328, %v81
  %v330 = vpop.permute.xlu0 %329
  %v332 = vsub.f32 %v75, %v330
  %v333 = vmul.f32 %v327, %v327
  %v334 = vmul.f32 %v332, %v332
  %v335 = vadd.f32 %v333, %v334
  %v336 = vmin.f32 %v322, %v335
  %337 = vset.pattern.permute.xlu0 43
  %338 = vperm.xlu0 %337, %v81
  %v339 = vpop.permute.xlu0 %338
  %v341 = vsub.f32 %v69, %v339
  %342 = vset.pattern.permute.xlu0 44
  %343 = vperm.xlu0 %342, %v81
  %v344 = vpop.permute.xlu0 %343
  %v346 = vsub.f32 %v75, %v344
  %v347 = vmul.f32 %v341, %v341
  %v348 = vmul.f32 %v346, %v346
  %v349 = vadd.f32 %v347, %v348
  %v350 = vmin.f32 %v336, %v349
  %vm351 = vcmp.ge.s32.totalorder %v80, 12
  %vm352 = vcmp.lt.s32.totalorder %v80, 24
  %vm353 = vmand %vm351, %vm352
  %v354 = vsel %vm353, %v350, %v225
  %vm355 = vcmask 1041408
  %v356 = vsel %vm355, %v354, 0.0
  %357 = vadd.xlane.f32.xlu0 %v356
  %v358 = vpop.xlane.xlu0 %357
  %v359 = vmul.f32 %v358, 0.020833334
  %vm360 = vcmask 1024
  %361 = vst.msk [vmem:[%s3] sm:$0x3] %vm360, %v359
  // Predicated region
  $region10: #{_forward.1} parent=0 // pred_check
    _
  $region11: #{_forward.1} parent=0 // pred_check_branch
    %363 = sbr.rel (0) target = $region13
  $region12: #{_forward.1} parent=0 // pred_region
    _
  $region13: #{_forward.1} parent=0 // pred_fallthru
    _
  // Predicated region
  $region14: #{_forward.1} parent=0 // pred_check
    _
  $region15: #{_forward.1} parent=0 // pred_check_branch
    %365 = sbr.rel (0) target = $region17
  $region16: #{_forward.1} parent=0 // pred_region
    _
  $region17: #{_forward.1} parent=0 // pred_fallthru
    _
  // Predicated region
  $region18: #{_forward.1} parent=0 // pred_check
    _
  $region19: #{_forward.1} parent=0 // pred_check_branch
    %367 = sbr.rel (0) target = $region21
  $region20: #{_forward.1} parent=0 // pred_region
    _
  $region21: #{_forward.1} parent=0 // pred_fallthru
    _
  // Predicated region
  $region22: #{_forward.1} parent=0 // pred_check
    _
  $region23: #{_forward.1} parent=0 // pred_check_branch
    %369 = sbr.rel (0) target = $region25
  $region24: #{_forward.1} parent=0 // pred_region
    _
  $region25: #{_forward.1} parent=0 // pred_fallthru
    _

</llo_original>
